<compile_context>
chip_gen: v6e
topology: v6e:2x2x1
jax: 0.10.0
libtpu: 0.0.40
codegen_flags: <defaults>
</compile_context>

<pallas_src>
import functools

import jax
import jax.numpy as jnp
from jax import lax
from jax.experimental import pallas as pl
from jax.experimental.pallas import tpu as pltpu


def _cdiv(a, b):
    return -(-a // b)


def _vmem_capacity_bytes():
    """Physical VMEM per TensorCore; conservative (smallest) fallback."""
    try:
        return int(pltpu.get_tpu_info().vmem_capacity_bytes)
    except Exception:
        return 64 << 20  # assume v7x-class budget -> always safe


# ---------------------------------------------------------------------------
# Kernels
# ---------------------------------------------------------------------------

def _mask_tail(x, chunk, d, tk):
    """Zero the lanes of an (rows, tk) block that fall past the true feature
    width `d`.  Only called when d % tk != 0 (static condition)."""
    valid = d - chunk * tk                      # == tk for every non-tail chunk
    col = lax.broadcasted_iota(jnp.int32, x.shape, 1)
    return jnp.where(col < valid, x, jnp.zeros_like(x))


def _gram_stacked_kernel(t_ref, s_ref, g_ref, *, d, tk):
    """Small-B path: one resident (2B, 2B) f32 accumulator, grid = (k_steps,)."""
    k = pl.program_id(0)

    @pl.when(k == 0)
    def _():
        g_ref[...] = jnp.zeros_like(g_ref)

    # Stack the teacher/student tiles in VMEM (no extra HBM traffic) so a
    # single MXU push per step computes both Grams at once.
    ts = jnp.concatenate([t_ref[...], s_ref[...]], axis=0)      # (2B, tk)
    if d % tk != 0:
        ts = _mask_tail(ts, k, d, tk)

    dn = (((1,), (1,)), ((), ()))                                # z @ z.T
    g_ref[...] += lax.dot_general(ts, ts, dn, preferred_element_type=jnp.float32)


def _gram_pair_kernel(t_ref, s_ref, gt_ref, gs_ref, *, d, tk, k_steps):
    """Large-B path: two resident (B, B) f32 accumulators, grid = (n_split, k_steps)."""
    p = pl.program_id(0)
    k = pl.program_id(1)

    @pl.when(k == 0)
    def _():
        gt_ref[...] = jnp.zeros_like(gt_ref)
        gs_ref[...] = jnp.zeros_like(gs_ref)

    t = t_ref[...]
    s = s_ref[...]
    if d % tk != 0:
        c = p * k_steps + k                     # global feature-chunk index
        t = _mask_tail(t, c, d, tk)
        s = _mask_tail(s, c, d, tk)

    dn = (((1,), (1,)), ((), ()))
    # TODO(synk): verify in the bundle dump that the implicit RHS transpose
    # (vxpose) stays hidden under HBM DMA for large-B f32 (compute-bound) runs.
    gt_ref[...] += lax.dot_general(t, t, dn, preferred_element_type=jnp.float32)
    gs_ref[...] += lax.dot_general(s, s, dn, preferred_element_type=jnp.float32)


# ---------------------------------------------------------------------------
# Wrapper
# ---------------------------------------------------------------------------

def _input_block_spec(block_shape, index_map, bufs):
    if bufs != 2:
        try:
            return pl.BlockSpec(block_shape, index_map,
                                pipeline_mode=pl.Buffered(bufs))
        except Exception:  # older jax without pipeline_mode -> default 2-deep
            pass
    return pl.BlockSpec(block_shape, index_map)


def spkd_loss(student, teacher, reduction="batchmean", *,
              max_tk=None, use_stacked=None, n_split=None):
    """SPKD loss.  student/teacher: (B, C, H, W) (or any (B, ...)) arrays.

    max_tk / use_stacked / n_split are optional overrides (None = auto), used
    mainly to exercise specific code paths in tests.
    """
    assert student.shape == teacher.shape
    b = teacher.shape[0]
    z_s = student.reshape(b, -1)    # native dtype end-to-end; f32 MXU accumulation
    z_t = teacher.reshape(b, -1)
    d = z_s.shape[1]
    itemsize = jnp.dtype(z_s.dtype).itemsize

    # ---- chip-aware VMEM / tile budget -----------------------------------
    vmem_cap = _vmem_capacity_bytes()
    small_vmem = vmem_cap <= (96 << 20)          # v7x-class: 64 MiB/TC, 2 TCs
    usable = (52 << 20) if small_vmem else (100 << 20)
    if max_tk is None:
        max_tk = 4096 if small_vmem else 8192    # bigger DMAs on 128-MiB chips

    if use_stacked is None:
        use_stacked = b <= 256                   # (2B,2B) f32 accumulator <= 1 MiB

    headroom = 4 << 20
    acc_bytes = ((2 * b) * (2 * b) * 4 * 2) if use_stacked else (2 * b * b * 4 * 2)
    input_budget = max(usable - acc_bytes - headroom, 0)

    bufs = 2
    tk = (input_budget // (2 * bufs * b * itemsize)) // 128 * 128
    tk = int(max(128, min(tk, max_tk)))
    if tk >= d:
        tk = d                                   # single full-width chunk
    n_chunks = _cdiv(d, tk)
    if n_chunks > 1 and b * tk * itemsize <= (512 << 10):
        bufs = 3                                 # tiny per-step DMAs: deepen pipeline

    # K split across TensorCores: only on 2-TC chips and only when it divides
    # the chunk count exactly (no phantom chunks, no wasted HBM traffic).
    if use_stacked:
        n_split = 1
    else:
        if n_split is None:
            n_split = 2 if (small_vmem and n_chunks >= 2) else 1
        if n_split == 2 and n_chunks % 2 != 0:
            n_split = 1
    k_steps = n_chunks // n_split

    vmem_need = 2 * bufs * b * tk * itemsize + acc_bytes + headroom
    vmem_limit = int(min(max(vmem_need, 16 << 20), usable))

    flops = (8 if use_stacked else 4) * b * b * d
    bytes_out = (4 * b * b * 4) if use_stacked else (2 * n_split * b * b * 4)
    cost = pl.CostEstimate(flops=flops, transcendentals=0,
                           bytes_accessed=2 * b * d * itemsize + bytes_out)

    if use_stacked:
        in_spec = _input_block_spec((b, tk), lambda k: (0, k), bufs)
        kernel = functools.partial(_gram_stacked_kernel, d=d, tk=tk)
        g = pl.pallas_call(
            kernel,
            out_shape=jax.ShapeDtypeStruct((2 * b, 2 * b), jnp.float32),
            grid_spec=pltpu.PrefetchScalarGridSpec(
                num_scalar_prefetch=0,
                grid=(k_steps,),
                in_specs=[in_spec, in_spec],
                out_specs=pl.BlockSpec((2 * b, 2 * b), lambda k: (0, 0)),
            ),
            compiler_params=pltpu.CompilerParams(
                dimension_semantics=("arbitrary",),
                vmem_limit_bytes=vmem_limit,
            ),
            cost_estimate=cost,
        )(z_t, z_s)
        gt = g[:b, :b]
        gs = g[b:, b:]
    else:
        in_spec = _input_block_spec(
            (b, tk), lambda p, k: (0, p * k_steps + k), bufs)
        out_spec = pl.BlockSpec((None, b, b), lambda p, k: (p, 0, 0))
        kernel = functools.partial(_gram_pair_kernel, d=d, tk=tk, k_steps=k_steps)
        gram_shape = jax.ShapeDtypeStruct((n_split, b, b), jnp.float32)
        # TODO(synk): on v7x confirm the leading "parallel" axis actually shards
        # across both TensorCores (else switch to pltpu.CORE_PARALLEL).
        gt_parts, gs_parts = pl.pallas_call(
            kernel,
            out_shape=(gram_shape, gram_shape),
            grid_spec=pltpu.PrefetchScalarGridSpec(
                num_scalar_prefetch=0,
                grid=(n_split, k_steps),
                in_specs=[in_spec, in_spec],
                out_specs=(out_spec, out_spec),
            ),
            compiler_params=pltpu.CompilerParams(
                dimension_semantics=("parallel", "arbitrary"),
                vmem_limit_bytes=vmem_limit,
            ),
            cost_estimate=cost,
        )(z_t, z_s)
        gt = jnp.sum(gt_parts, axis=0)
        gs = jnp.sum(gs_parts, axis=0)

    # Tiny O(B^2) epilogue: L1-normalize rows (eps=1e-12, matching F.normalize)
    # and take the squared Frobenius norm of the difference.
    eps = jnp.float32(1e-12)
    gt_n = gt / jnp.maximum(jnp.sum(jnp.abs(gt), axis=1, keepdims=True), eps)
    gs_n = gs / jnp.maximum(jnp.sum(jnp.abs(gs), axis=1, keepdims=True), eps)
    diff = gt_n - gs_n
    loss = jnp.sum(diff * diff)
    if reduction == "batchmean":
        loss = loss / (b ** 2)
    return loss


def _spkd_ref(student, teacher, reduction="batchmean"):
    """Pure-JAX reference for verification."""
    b = teacher.shape[0]
    eps = 1e-12

    def gram_norm(z):
        z = z.reshape(b, -1).astype(jnp.float32)
        g = z @ z.T
        return g / jnp.maximum(jnp.sum(jnp.abs(g), axis=1, keepdims=True), eps)

    diff = gram_norm(teacher) - gram_norm(student)
    loss = jnp.sum(diff * diff)
    return loss / (b ** 2) if reduction == "batchmean" else loss


if __name__ == "__main__":
    key = jax.random.PRNGKey(0)
    ks, kt, k3, k4 = jax.random.split(key, 4)

    # 1) Default path: stacked small-B kernel, single full-width chunk.
    student = jax.random.normal(ks, (2, 4, 16, 16), dtype=jnp.float32)
    teacher = jax.random.normal(kt, (2, 4, 16, 16), dtype=jnp.float32)
    out = jax.block_until_ready(spkd_loss(student, teacher))
    ref = _spkd_ref(student, teacher)
    assert jnp.allclose(out, ref, rtol=1e-4, atol=1e-6), (out, ref)

    # 2) Stacked kernel, ragged D (=300), forced multi-chunk -> in-kernel tail
    #    mask + 3-deep input buffering, no padded copies.
    s2 = jax.random.normal(k3, (2, 3, 10, 10), dtype=jnp.float32)
    t2 = jax.random.normal(k4, (2, 3, 10, 10), dtype=jnp.float32)
    out2 = jax.block_until_ready(spkd_loss(s2, t2, max_tk=128))
    ref2 = _spkd_ref(s2, t2)
    assert jnp.allclose(out2, ref2, rtol=1e-4, atol=1e-6), (out2, ref2)

    # 3) Large-B ("pair") kernel path, ragged D, n_split = 1.
    out3 = jax.block_until_ready(spkd_loss(s2, t2, max_tk=128, use_stacked=False))
    assert jnp.allclose(out3, ref2, rtol=1e-4, atol=1e-6), (out3, ref2)

    # 4) Pair kernel with the 2-way K split (even chunk count, D = 512).
    s4 = jax.random.normal(k3, (2, 2, 16, 16), dtype=jnp.float32)
    t4 = jax.random.normal(k4, (2, 2, 16, 16), dtype=jnp.float32)
    out4 = jax.block_until_ready(
        spkd_loss(s4, t4, max_tk=128, use_stacked=False, n_split=2))
    ref4 = _spkd_ref(s4, t4)
    assert jnp.allclose(out4, ref4, rtol=1e-4, atol=1e-6), (out4, ref4)

    # 5) Native bf16 streaming with f32 MXU accumulation.
    s5 = s2.astype(jnp.bfloat16)
    t5 = t2.astype(jnp.bfloat16)
    out5 = jax.block_until_ready(spkd_loss(s5, t5, max_tk=128))
    ref5 = _spkd_ref(s5, t5)
    assert jnp.allclose(out5, ref5, rtol=5e-3, atol=1e-5), (out5, ref5)

    print("KERNEL_OK")
</pallas_src>

<mosaic_0001>
module attributes {stable_mosaic.version = 11 : i64} {
  func.func @_gram_stacked_kernel(%arg0: i32, %arg1: memref<2x1024xf32, #tpu.memory_space<vmem>>, %arg2: memref<2x1024xf32, #tpu.memory_space<vmem>>, %arg3: memref<4x4xf32, #tpu.memory_space<vmem>>) attributes {dimension_semantics = [#tpu.dimension_semantics<arbitrary>], iteration_bounds = array<i64: 1>, scalar_prefetch = 0 : i64, scratch_operands = 0 : i64, tpu.core_type = #tpu.core_type<tc>, window_params = [{transform_indices = @transform_0, window_bounds = array<i64: 2, 1024>}, {transform_indices = @transform_1, window_bounds = array<i64: 2, 1024>}, {pipeline_mode = #tpu.pipeline_mode<synchronous>, transform_indices = @transform_2, window_bounds = array<i64: 4, 4>}]} {
    %c0_i32 = arith.constant 0 : i32
    %0 = arith.cmpi eq, %arg0, %c0_i32 : i32
    %1 = arith.extui %0 : i1 to i32
    %c0_i32_0 = arith.constant 0 : i32
    %2 = arith.cmpi ne, %1, %c0_i32_0 : i32
    scf.if %2 {
      %cst_8 = arith.constant 0.000000e+00 : f32
      %10 = vector.broadcast %cst_8 : f32 to vector<4x4xf32>
      %c0_9 = arith.constant 0 : index
      %c0_10 = arith.constant 0 : index
      %11 = vector.load %arg3[%c0_9, %c0_10] : memref<4x4xf32, #tpu.memory_space<vmem>>, vector<4x4xf32>
      tpu.vector_store %arg3[%c0_9, %c0_10], %10 {strides = array<i32>} : memref<4x4xf32, #tpu.memory_space<vmem>>, vector<4x4xf32>,
    } else {
    }
    %c0 = arith.constant 0 : index
    %c0_1 = arith.constant 0 : index
    %3 = vector.load %arg1[%c0, %c0_1] : memref<2x1024xf32, #tpu.memory_space<vmem>>, vector<2x1024xf32>
    %c0_2 = arith.constant 0 : index
    %c0_3 = arith.constant 0 : index
    %4 = vector.load %arg2[%c0_2, %c0_3] : memref<2x1024xf32, #tpu.memory_space<vmem>>, vector<2x1024xf32>
    %5 = tpu.concatenate %3, %4 in 0 : vector<2x1024xf32>, vector<2x1024xf32> -> vector<4x1024xf32>
    %c0_4 = arith.constant 0 : index
    %c0_5 = arith.constant 0 : index
    %6 = vector.load %arg3[%c0_4, %c0_5] : memref<4x4xf32, #tpu.memory_space<vmem>>, vector<4x4xf32>
    %cst = arith.constant dense<0.000000e+00> : vector<4x4xf32>
    %7 = tpu.matmul %5, %5, %cst {dimension_numbers = #tpu.dot_dimension_numbers<[1], [1], [0], [0], [0, 0, 1, 0], [], []>} : vector<4x1024xf32>, vector<4x1024xf32>, vector<4x4xf32> -> vector<4x4xf32>
    %8 = arith.addf %6, %7 : vector<4x4xf32>
    %c0_6 = arith.constant 0 : index
    %c0_7 = arith.constant 0 : index
    %9 = vector.load %arg3[%c0_6, %c0_7] : memref<4x4xf32, #tpu.memory_space<vmem>>, vector<4x4xf32>
    tpu.vector_store %arg3[%c0_6, %c0_7], %8 {strides = array<i32>} : memref<4x4xf32, #tpu.memory_space<vmem>>, vector<4x4xf32>,
    return
  }
  func.func @transform_0(%arg0: i32) -> (i32, i32) {
    %c0_i32 = arith.constant 0 : i32
    %c0_i32_0 = arith.constant 0 : i32
    return %c0_i32, %arg0 : i32, i32
  }
  func.func @transform_1(%arg0: i32) -> (i32, i32) {
    %c0_i32 = arith.constant 0 : i32
    %c0_i32_0 = arith.constant 0 : i32
    return %c0_i32, %arg0 : i32, i32
  }
  func.func @transform_2(%arg0: i32) -> (i32, i32) {
    %c0_i32 = arith.constant 0 : i32
    %c0_i32_0 = arith.constant 0 : i32
    %c0_i32_1 = arith.constant 0 : i32
    return %c0_i32, %c0_i32_0 : i32, i32
  }
}

</mosaic_0001>

<llo_original>
// kernel: tpu_custom_call.1
$region0: #{tpu_custom_call.1}
  #allocation0 [shape = 'u32[]', space=smem, size = 0x4, offset = 0x4, fixed_abs, tag = 'smem constant byte address 0x4 - core index']
  #allocation1 [shape = 'u32[144,128]{1,0:T(1,128)}', space=vmem, size = 0x12000, scoped, tag = 'internal scratch']
  %s0 = inlined_call_operand.hbm [shape: f32[2,1024], index: 0, kind: input, shape index: {}]
  %s1 = inlined_call_operand.hbm [shape: f32[2,1024], index: 1, kind: input, shape index: {}]
  %s2 = inlined_call_operand.hbm [shape: f32[4,4], index: 2, kind: output, shape index: {}]
  %s3 = sld [smem:[#allocation0]]
  $region30: #{tpu_custom_call.1} parent=0
    _
  %s5 = ssub.s32 1, %s3
  %s6 = scalar_select 0, %s5, %s3
  $region1: #{tpu_custom_call.1} parent=0
    #allocation2 [shape = 'u8[8192]{0}', space=vmem, size = 0x2000, scoped, tag = 'input window, operand 0, single buffered']
    #allocation3 [shape = 's32[1]{0}', space=sflag, size = 0x4, scoped, tag = 'scoped memory for tpu_custom_call.1']
    #allocation4 [shape = 's32[1]{0}', space=sflag, size = 0x4, scoped, tag = 'scoped memory for tpu_custom_call.1']
    #allocation5 [shape = 'u8[8192]{0}', space=vmem, size = 0x2000, scoped, tag = 'input window, operand 1, single buffered']
    #allocation6 [shape = 's32[1]{0}', space=sflag, size = 0x4, scoped, tag = 'scoped memory for tpu_custom_call.1']
    #allocation7 [shape = 'u8[2048]{0}', space=vmem, size = 0x800, scoped, tag = 'output window, operand 0, single buffered']
    %7 = vsyncpa [#allocation3], 0
    %8 = vsyncpa [#allocation6], 0
    %9 = vsyncpa [#allocation4], 0
    // Predicated region
    $region2: #{tpu_custom_call.1} parent=1 // pred_check
      _
    $region3: #{tpu_custom_call.1} parent=1 // pred_check_branch
      %11 = sbr.rel (0) target = $region5
    $region4: #{tpu_custom_call.1} parent=1 // pred_region
      %s13 = ssub.s32 256, 256
      %14 = vsyncadd [#allocation3], %s13
      %s16 = sshll.u32 [#allocation2], 4
      %s17 = int_to_ptr.vmem [resolvable:$true] %s16
      %19 = dma.hbm_to_vmem [thread:$0]  %s0, 256, %s17, [#allocation3]
    $region5: #{tpu_custom_call.1} parent=1 // pred_fallthru
      _
    // Predicated region
    $region6: #{tpu_custom_call.1} parent=1 // pred_check
      _
    $region7: #{tpu_custom_call.1} parent=1 // pred_check_branch
      %21 = sbr.rel (0) target = $region9
    $region8: #{tpu_custom_call.1} parent=1 // pred_region
      %s23 = ssub.s32 256, 256
      %24 = vsyncadd [#allocation6], %s23
      %s26 = sshll.u32 [#allocation5], 4
      %s27 = int_to_ptr.vmem [resolvable:$true] %s26
      %29 = dma.hbm_to_vmem [thread:$0]  %s1, 256, %s27, [#allocation6]
    $region9: #{tpu_custom_call.1} parent=1 // pred_fallthru
      _
    // Predicated region
    $region10: #{tpu_custom_call.1} parent=1 // pred_check
      _
    $region11: #{tpu_custom_call.1} parent=1 // pred_check_branch
      %31 = sbr.rel (0) target = $region13
    $region12: #{tpu_custom_call.1} parent=1 // pred_region
      %32 = dma.done [#allocation3], 256
    $region13: #{tpu_custom_call.1} parent=1 // pred_fallthru
      _
    // Predicated region
    $region14: #{tpu_custom_call.1} parent=1 // pred_check
      _
    $region15: #{tpu_custom_call.1} parent=1 // pred_check_branch
      %34 = sbr.rel (0) target = $region17
    $region16: #{tpu_custom_call.1} parent=1 // pred_region
      %35 = dma.done [#allocation6], 256
    $region17: #{tpu_custom_call.1} parent=1 // pred_fallthru
      _
    %p36 = scmp.eq.s32.totalorder 0, 0
    // Predicated region
    $region18: #{tpu_custom_call.1} parent=1 // pred_check
      %p37 = pneg %p36
    $region19: #{tpu_custom_call.1} parent=1 // pred_check_branch
      %39 = sbr.rel (%p37) target = $region21
    $region20: #{tpu_custom_call.1} parent=1 // pred_region
      %vm40 = vcmask 27648
      %41 = vst.msk [vmem:[#allocation7] sm:$0xf] %vm40, 0.0
    $region21: #{tpu_custom_call.1} parent=1 // pred_fallthru
      _
    %v42 = vld [vmem:[#allocation2] sm:$0xff]
    %v43 = vld [vmem:[#allocation2 + $0x8] sm:$0xff]
    %v44 = vld [vmem:[#allocation5] sm:$0xff]
    %v45 = vld [vmem:[#allocation5 + $0x8] sm:$0xff]
    %v48 = vcombine.high %v42, %v42
    %v50 = vunpack.c.l.s4 1983009808
    %v51 = vunpack.c.0.s8 %v50
    %v52 = vlaneseq
    %v53 = vshrl.u32 %v52, 7
    %v54 = vsub.s32 %v51, %v53
    %v55 = vrot.slane %v42, %v54
    %v57 = vunpack.c.l.s4 1983009808
    %v58 = vunpack.c.0.s8 %v57
    %v59 = vlaneseq
    %v60 = vshrl.u32 %v59, 7
    %v61 = vsub.s32 %v58, %v60
    %v62 = vrot.slane %v48, %v61
    %v63 = vcombine.high %v55, %v55
    %v64 = vcombine.high %v62, %v62
    %v65 = vcombine.high %v43, %v43
    %v67 = vunpack.c.l.s4 1983009808
    %v68 = vunpack.c.0.s8 %v67
    %v69 = vlaneseq
    %v70 = vshrl.u32 %v69, 7
    %v71 = vsub.s32 %v68, %v70
    %v72 = vrot.slane %v43, %v71
    %v74 = vunpack.c.l.s4 1983009808
    %v75 = vunpack.c.0.s8 %v74
    %v76 = vlaneseq
    %v77 = vshrl.u32 %v76, 7
    %v78 = vsub.s32 %v75, %v77
    %v79 = vrot.slane %v65, %v78
    %v80 = vcombine.high %v72, %v72
    %v81 = vcombine.high %v79, %v79
    %v92 = vcombine.low %v44, %v44
    %v94 = vunpack.c.l.s4 1983009808
    %v95 = vunpack.c.0.s8 %v94
    %v96 = vlaneseq
    %v97 = vshrl.u32 %v96, 7
    %v98 = vsub.s32 %v95, %v97
    %v99 = vrot.slane %v92, %v98
    %v101 = vunpack.c.l.s4 1983009808
    %v102 = vunpack.c.0.s8 %v101
    %v103 = vlaneseq
    %v104 = vshrl.u32 %v103, 7
    %v105 = vsub.s32 %v102, %v104
    %v106 = vrot.slane %v44, %v105
    %v107 = vcombine.high %v99, %v99
    %v108 = vcombine.high %v106, %v106
    %v109 = vcombine.low %v45, %v45
    %v111 = vunpack.c.l.s4 1983009808
    %v112 = vunpack.c.0.s8 %v111
    %v113 = vlaneseq
    %v114 = vshrl.u32 %v113, 7
    %v115 = vsub.s32 %v112, %v114
    %v116 = vrot.slane %v109, %v115
    %v118 = vunpack.c.l.s4 1983009808
    %v119 = vunpack.c.0.s8 %v118
    %v120 = vlaneseq
    %v121 = vshrl.u32 %v120, 7
    %v122 = vsub.s32 %v119, %v121
    %v123 = vrot.slane %v45, %v122
    %v124 = vcombine.high %v116, %v116
    %v125 = vcombine.high %v123, %v123
    %vm134 = vcmask 1041408
    %v135 = vsel %vm134, %v55, %v99
    %v136 = vsel %vm134, %v63, %v107
    %v137 = vsel %vm134, %v62, %v106
    %v138 = vsel %vm134, %v64, %v108
    %v139 = vsel %vm134, %v72, %v116
    %v140 = vsel %vm134, %v80, %v124
    %v141 = vsel %vm134, %v79, %v123
    %v142 = vsel %vm134, %v81, %v125
    %v143 = vld [vmem:[#allocation7] sm:$0xf]
    %144 = vmatprep.subr.mxu0 0.0
    %145 = vmatpush1.xpose.msra.mxu0 0.0
    %146 = vmatprep.subr.mxu0 0.0
    %147 = vmatpush1.xpose.msra.mxu0 0.0
    %148 = vmatprep.subr.mxu0 0.0
    %149 = vmatpush1.xpose.msra.mxu0 0.0
    %150 = vmatprep.subr.mxu0 0.0
    %151 = vmatpush1.xpose.msra.mxu0 0.0
    %152 = vmatprep.subr.mxu0 0.0
    %153 = vmatpush1.xpose.msra.mxu0 0.0
    %154 = vmatprep.subr.mxu0 0.0
    %155 = vmatpush1.xpose.msra.mxu0 0.0
    %156 = vmatprep.subr.mxu0 0.0
    %157 = vmatpush1.xpose.msra.mxu0 0.0
    %158 = vmatprep.subr.mxu0 0.0
    %159 = vmatpush1.xpose.msra.mxu0 0.0
    %160 = vmatprep.subr.mxu0 0.0
    %161 = vmatpush1.xpose.msra.mxu0 0.0
    %162 = vmatprep.subr.mxu0 0.0
    %163 = vmatpush1.xpose.msra.mxu0 0.0
    %164 = vmatprep.subr.mxu0 0.0
    %165 = vmatpush1.xpose.msra.mxu0 0.0
    %166 = vmatprep.subr.mxu0 0.0
    %167 = vmatpush1.xpose.msra.mxu0 0.0
    %168 = vmatprep.subr.mxu0 0.0
    %169 = vmatpush1.xpose.msra.mxu0 0.0
    %170 = vmatprep.subr.mxu0 0.0
    %171 = vmatpush1.xpose.msra.mxu0 0.0
    %172 = vmatprep.subr.mxu0 0.0
    %173 = vmatpush1.xpose.msra.mxu0 0.0
    %174 = vmatprep.subr.mxu0 %v136
    %175 = vmatpush1.xpose.msra.mxu0 %v135
    %176 = vmatprep.subr.mxu0 0.0
    %177 = vmatpush2.xpose.msra.mxu0 0.0
    %178 = vmatprep.subr.mxu0 0.0
    %179 = vmatpush2.xpose.msra.mxu0 0.0
    %180 = vmatprep.subr.mxu0 0.0
    %181 = vmatpush2.xpose.msra.mxu0 0.0
    %182 = vmatprep.subr.mxu0 0.0
    %183 = vmatpush2.xpose.msra.mxu0 0.0
    %184 = vmatprep.subr.mxu0 0.0
    %185 = vmatpush2.xpose.msra.mxu0 0.0
    %186 = vmatprep.subr.mxu0 0.0
    %187 = vmatpush2.xpose.msra.mxu0 0.0
    %188 = vmatprep.subr.mxu0 0.0
    %189 = vmatpush2.xpose.msra.mxu0 0.0
    %190 = vmatprep.subr.mxu0 0.0
    %191 = vmatpush2.xpose.msra.mxu0 0.0
    %192 = vmatprep.subr.mxu0 0.0
    %193 = vmatpush2.xpose.msra.mxu0 0.0
    %194 = vmatprep.subr.mxu0 0.0
    %195 = vmatpush2.xpose.msra.mxu0 0.0
    %196 = vmatprep.subr.mxu0 0.0
    %197 = vmatpush2.xpose.msra.mxu0 0.0
    %198 = vmatprep.subr.mxu0 0.0
    %199 = vmatpush2.xpose.msra.mxu0 0.0
    %200 = vmatprep.subr.mxu0 0.0
    %201 = vmatpush2.xpose.msra.mxu0 0.0
    %202 = vmatprep.subr.mxu0 0.0
    %203 = vmatpush2.xpose.msra.mxu0 0.0
    %204 = vmatprep.subr.mxu0 0.0
    %205 = vmatpush2.xpose.msra.mxu0 0.0
    %206 = vmatprep.subr.mxu0 0.0
    %207 = vmatpush2.xpose.msra.mxu0 0.0
    %208 = vmatprep.mubr.f32.mxu0 %v136
    %209 = vmatmul.mubr.f32.gmra.mxu0 %v135
    %v210 = vpop.f32.mrf.mxu0
    %v211 = vadd.f32 0.0, %v210
    %v212 = vpop.f32.mrf.mxu0
    %213 = vdwg.mxu0
    %214 = vmatprep.subr.mxu0 0.0
    %215 = vmatpush1.xpose.msra.mxu0 0.0
    %216 = vmatprep.subr.mxu0 0.0
    %217 = vmatpush1.xpose.msra.mxu0 0.0
    %218 = vmatprep.subr.mxu0 0.0
    %219 = vmatpush1.xpose.msra.mxu0 0.0
    %220 = vmatprep.subr.mxu0 0.0
    %221 = vmatpush1.xpose.msra.mxu0 0.0
    %222 = vmatprep.subr.mxu0 0.0
    %223 = vmatpush1.xpose.msra.mxu0 0.0
    %224 = vmatprep.subr.mxu0 0.0
    %225 = vmatpush1.xpose.msra.mxu0 0.0
    %226 = vmatprep.subr.mxu0 0.0
    %227 = vmatpush1.xpose.msra.mxu0 0.0
    %228 = vmatprep.subr.mxu0 0.0
    %229 = vmatpush1.xpose.msra.mxu0 0.0
    %230 = vmatprep.subr.mxu0 0.0
    %231 = vmatpush1.xpose.msra.mxu0 0.0
    %232 = vmatprep.subr.mxu0 0.0
    %233 = vmatpush1.xpose.msra.mxu0 0.0
    %234 = vmatprep.subr.mxu0 0.0
    %235 = vmatpush1.xpose.msra.mxu0 0.0
    %236 = vmatprep.subr.mxu0 0.0
    %237 = vmatpush1.xpose.msra.mxu0 0.0
    %238 = vmatprep.subr.mxu0 0.0
    %239 = vmatpush1.xpose.msra.mxu0 0.0
    %240 = vmatprep.subr.mxu0 0.0
    %241 = vmatpush1.xpose.msra.mxu0 0.0
    %242 = vmatprep.subr.mxu0 0.0
    %243 = vmatpush1.xpose.msra.mxu0 0.0
    %244 = vmatprep.subr.mxu0 %v138
    %245 = vmatpush1.xpose.msra.mxu0 %v137
    %246 = vmatprep.subr.mxu0 0.0
    %247 = vmatpush2.xpose.msra.mxu0 0.0
    %248 = vmatprep.subr.mxu0 0.0
    %249 = vmatpush2.xpose.msra.mxu0 0.0
    %250 = vmatprep.subr.mxu0 0.0
    %251 = vmatpush2.xpose.msra.mxu0 0.0
    %252 = vmatprep.subr.mxu0 0.0
    %253 = vmatpush2.xpose.msra.mxu0 0.0
    %254 = vmatprep.subr.mxu0 0.0
    %255 = vmatpush2.xpose.msra.mxu0 0.0
    %256 = vmatprep.subr.mxu0 0.0
    %257 = vmatpush2.xpose.msra.mxu0 0.0
    %258 = vmatprep.subr.mxu0 0.0
    %259 = vmatpush2.xpose.msra.mxu0 0.0
    %260 = vmatprep.subr.mxu0 0.0
    %261 = vmatpush2.xpose.msra.mxu0 0.0
    %262 = vmatprep.subr.mxu0 0.0
    %263 = vmatpush2.xpose.msra.mxu0 0.0
    %264 = vmatprep.subr.mxu0 0.0
    %265 = vmatpush2.xpose.msra.mxu0 0.0
    %266 = vmatprep.subr.mxu0 0.0
    %267 = vmatpush2.xpose.msra.mxu0 0.0
    %268 = vmatprep.subr.mxu0 0.0
    %269 = vmatpush2.xpose.msra.mxu0 0.0
    %270 = vmatprep.subr.mxu0 0.0
    %271 = vmatpush2.xpose.msra.mxu0 0.0
    %272 = vmatprep.subr.mxu0 0.0
    %273 = vmatpush2.xpose.msra.mxu0 0.0
    %274 = vmatprep.subr.mxu0 0.0
    %275 = vmatpush2.xpose.msra.mxu0 0.0
    %276 = vmatprep.subr.mxu0 0.0
    %277 = vmatpush2.xpose.msra.mxu0 0.0
    %278 = vmatprep.mubr.f32.mxu0 %v138
    %279 = vmatmul.mubr.f32.gmra.mxu0 %v137
    %v280 = vpop.f32.mrf.mxu0
    %v281 = vadd.f32 %v211, %v280
    %v282 = vpop.f32.mrf.mxu0
    %283 = vdwg.mxu0
    %284 = vmatprep.subr.mxu0 0.0
    %285 = vmatpush1.xpose.msra.mxu0 0.0
    %286 = vmatprep.subr.mxu0 0.0
    %287 = vmatpush1.xpose.msra.mxu0 0.0
    %288 = vmatprep.subr.mxu0 0.0
    %289 = vmatpush1.xpose.msra.mxu0 0.0
    %290 = vmatprep.subr.mxu0 0.0
    %291 = vmatpush1.xpose.msra.mxu0 0.0
    %292 = vmatprep.subr.mxu0 0.0
    %293 = vmatpush1.xpose.msra.mxu0 0.0
    %294 = vmatprep.subr.mxu0 0.0
    %295 = vmatpush1.xpose.msra.mxu0 0.0
    %296 = vmatprep.subr.mxu0 0.0
    %297 = vmatpush1.xpose.msra.mxu0 0.0
    %298 = vmatprep.subr.mxu0 0.0
    %299 = vmatpush1.xpose.msra.mxu0 0.0
    %300 = vmatprep.subr.mxu0 0.0
    %301 = vmatpush1.xpose.msra.mxu0 0.0
    %302 = vmatprep.subr.mxu0 0.0
    %303 = vmatpush1.xpose.msra.mxu0 0.0
    %304 = vmatprep.subr.mxu0 0.0
    %305 = vmatpush1.xpose.msra.mxu0 0.0
    %306 = vmatprep.subr.mxu0 0.0
    %307 = vmatpush1.xpose.msra.mxu0 0.0
    %308 = vmatprep.subr.mxu0 0.0
    %309 = vmatpush1.xpose.msra.mxu0 0.0
    %310 = vmatprep.subr.mxu0 0.0
    %311 = vmatpush1.xpose.msra.mxu0 0.0
    %312 = vmatprep.subr.mxu0 0.0
    %313 = vmatpush1.xpose.msra.mxu0 0.0
    %314 = vmatprep.subr.mxu0 %v140
    %315 = vmatpush1.xpose.msra.mxu0 %v139
    %316 = vmatprep.subr.mxu0 0.0
    %317 = vmatpush2.xpose.msra.mxu0 0.0
    %318 = vmatprep.subr.mxu0 0.0
    %319 = vmatpush2.xpose.msra.mxu0 0.0
    %320 = vmatprep.subr.mxu0 0.0
    %321 = vmatpush2.xpose.msra.mxu0 0.0
    %322 = vmatprep.subr.mxu0 0.0
    %323 = vmatpush2.xpose.msra.mxu0 0.0
    %324 = vmatprep.subr.mxu0 0.0
    %325 = vmatpush2.xpose.msra.mxu0 0.0
    %326 = vmatprep.subr.mxu0 0.0
    %327 = vmatpush2.xpose.msra.mxu0 0.0
    %328 = vmatprep.subr.mxu0 0.0
    %329 = vmatpush2.xpose.msra.mxu0 0.0
    %330 = vmatprep.subr.mxu0 0.0
    %331 = vmatpush2.xpose.msra.mxu0 0.0
    %332 = vmatprep.subr.mxu0 0.0
    %333 = vmatpush2.xpose.msra.mxu0 0.0
    %334 = vmatprep.subr.mxu0 0.0
    %335 = vmatpush2.xpose.msra.mxu0 0.0
    %336 = vmatprep.subr.mxu0 0.0
    %337 = vmatpush2.xpose.msra.mxu0 0.0
    %338 = vmatprep.subr.mxu0 0.0
    %339 = vmatpush2.xpose.msra.mxu0 0.0
    %340 = vmatprep.subr.mxu0 0.0
    %341 = vmatpush2.xpose.msra.mxu0 0.0
    %342 = vmatprep.subr.mxu0 0.0
    %343 = vmatpush2.xpose.msra.mxu0 0.0
    %344 = vmatprep.subr.mxu0 0.0
    %345 = vmatpush2.xpose.msra.mxu0 0.0
    %346 = vmatprep.subr.mxu0 0.0
    %347 = vmatpush2.xpose.msra.mxu0 0.0
    %348 = vmatprep.mubr.f32.mxu0 %v140
    %349 = vmatmul.mubr.f32.gmra.mxu0 %v139
    %v350 = vpop.f32.mrf.mxu0
    %v351 = vadd.f32 %v281, %v350
    %v352 = vpop.f32.mrf.mxu0
    %353 = vdwg.mxu0
    %354 = vmatprep.subr.mxu0 0.0
    %355 = vmatpush1.xpose.msra.mxu0 0.0
    %356 = vmatprep.subr.mxu0 0.0
    %357 = vmatpush1.xpose.msra.mxu0 0.0
    %358 = vmatprep.subr.mxu0 0.0
    %359 = vmatpush1.xpose.msra.mxu0 0.0
    %360 = vmatprep.subr.mxu0 0.0
    %361 = vmatpush1.xpose.msra.mxu0 0.0
    %362 = vmatprep.subr.mxu0 0.0
    %363 = vmatpush1.xpose.msra.mxu0 0.0
    %364 = vmatprep.subr.mxu0 0.0
    %365 = vmatpush1.xpose.msra.mxu0 0.0
    %366 = vmatprep.subr.mxu0 0.0
    %367 = vmatpush1.xpose.msra.mxu0 0.0
    %368 = vmatprep.subr.mxu0 0.0
    %369 = vmatpush1.xpose.msra.mxu0 0.0
    %370 = vmatprep.subr.mxu0 0.0
    %371 = vmatpush1.xpose.msra.mxu0 0.0
    %372 = vmatprep.subr.mxu0 0.0
    %373 = vmatpush1.xpose.msra.mxu0 0.0
    %374 = vmatprep.subr.mxu0 0.0
    %375 = vmatpush1.xpose.msra.mxu0 0.0
    %376 = vmatprep.subr.mxu0 0.0
    %377 = vmatpush1.xpose.msra.mxu0 0.0
    %378 = vmatprep.subr.mxu0 0.0
    %379 = vmatpush1.xpose.msra.mxu0 0.0
    %380 = vmatprep.subr.mxu0 0.0
    %381 = vmatpush1.xpose.msra.mxu0 0.0
    %382 = vmatprep.subr.mxu0 0.0
    %383 = vmatpush1.xpose.msra.mxu0 0.0
    %384 = vmatprep.subr.mxu0 %v142
    %385 = vmatpush1.xpose.msra.mxu0 %v141
    %386 = vmatprep.subr.mxu0 0.0
    %387 = vmatpush2.xpose.msra.mxu0 0.0
    %388 = vmatprep.subr.mxu0 0.0
    %389 = vmatpush2.xpose.msra.mxu0 0.0
    %390 = vmatprep.subr.mxu0 0.0
    %391 = vmatpush2.xpose.msra.mxu0 0.0
    %392 = vmatprep.subr.mxu0 0.0
    %393 = vmatpush2.xpose.msra.mxu0 0.0
    %394 = vmatprep.subr.mxu0 0.0
    %395 = vmatpush2.xpose.msra.mxu0 0.0
    %396 = vmatprep.subr.mxu0 0.0
    %397 = vmatpush2.xpose.msra.mxu0 0.0
    %398 = vmatprep.subr.mxu0 0.0
    %399 = vmatpush2.xpose.msra.mxu0 0.0
    %400 = vmatprep.subr.mxu0 0.0
    %401 = vmatpush2.xpose.msra.mxu0 0.0
    %402 = vmatprep.subr.mxu0 0.0
    %403 = vmatpush2.xpose.msra.mxu0 0.0
    %404 = vmatprep.subr.mxu0 0.0
    %405 = vmatpush2.xpose.msra.mxu0 0.0
    %406 = vmatprep.subr.mxu0 0.0
    %407 = vmatpush2.xpose.msra.mxu0 0.0
    %408 = vmatprep.subr.mxu0 0.0
    %409 = vmatpush2.xpose.msra.mxu0 0.0
    %410 = vmatprep.subr.mxu0 0.0
    %411 = vmatpush2.xpose.msra.mxu0 0.0
    %412 = vmatprep.subr.mxu0 0.0
    %413 = vmatpush2.xpose.msra.mxu0 0.0
    %414 = vmatprep.subr.mxu0 0.0
    %415 = vmatpush2.xpose.msra.mxu0 0.0
    %416 = vmatprep.subr.mxu0 0.0
    %417 = vmatpush2.xpose.msra.mxu0 0.0
    %418 = vmatprep.mubr.f32.mxu0 %v142
    %419 = vmatmul.mubr.f32.gmra.mxu0 %v141
    %v420 = vpop.f32.mrf.mxu0
    %v421 = vadd.f32 %v351, %v420
    %v422 = vpop.f32.mrf.mxu0
    %423 = vdwg.mxu0
    %v424 = vadd.f32 %v143, %v421
    %vm425 = vcmask 27648
    %426 = vst.msk [vmem:[#allocation7] sm:$0xf] %vm425, %v424
    // Predicated region
    $region22: #{tpu_custom_call.1} parent=1 // pred_check
      _
    $region23: #{tpu_custom_call.1} parent=1 // pred_check_branch
      %428 = sbr.rel (0) target = $region25
    $region24: #{tpu_custom_call.1} parent=1 // pred_region
      %s430 = ssub.s32 64, 64
      %431 = vsyncadd [#allocation4], %s430
      %s433 = sshll.u32 [#allocation7], 4
      %s434 = int_to_ptr.vmem [resolvable:$true] %s433
      %436 = dma.vmem_to_hbm [thread:$0]  %s434, 64, %s2, [#allocation4]
    $region25: #{tpu_custom_call.1} parent=1 // pred_fallthru
      _
    // Predicated region
    $region26: #{tpu_custom_call.1} parent=1 // pred_check
      _
    $region27: #{tpu_custom_call.1} parent=1 // pred_check_branch
      %438 = sbr.rel (0) target = $region29
    $region28: #{tpu_custom_call.1} parent=1 // pred_region
      %439 = dma.done [#allocation4], 64
    $region29: #{tpu_custom_call.1} parent=1 // pred_fallthru
      _
    %440 = vsyncpa [#allocation3], 1
    %441 = vsyncpa [#allocation6], 1
    %442 = vsyncpa [#allocation4], 1

</llo_original>
